<compile_context>
chip_gen: v5e
topology: v5e:2x2
jax: 0.10.0
libtpu: 0.0.40
codegen_flags: <defaults>
</compile_context>

<pallas_src>
import functools

import jax
import jax.numpy as jnp
from jax.experimental import pallas as pl
from jax.experimental.pallas import tpu as pltpu


# ------------------------------ VMEM budget (per generation) ---------------------------

def _vmem_budget_bytes():
    """~3/4 of physical VMEM, capped at 100 MiB.

    v5e/v6e (128 MiB physical) -> ~96 MiB; v7x (64 MiB physical) -> 48 MiB.
    Falls back to the conservative v7x-sized budget if the query is unavailable.
    """
    cap = None
    try:
        info = pltpu.get_tpu_info()
        cap = getattr(info, "vmem_capacity_bytes", None)
    except Exception:
        cap = None
    if not cap:
        cap = 64 * 1024 * 1024
    return int(min(cap * 3 // 4, 100 * 1024 * 1024))


# --------------------------- fused path (per-batch slab in VMEM) -----------------------

def _se_fused_kernel(x_ref, w1_ref, w2_ref, o_ref, *, inv_hw):
    # x_ref/o_ref: (Nb, C, HW) in x dtype; w1_ref: (C, Ch) f32; w2_ref: (Ch, C) f32.
    x = x_ref[...]
    pooled = jnp.sum(x, axis=-1, dtype=jnp.float32) * inv_hw                      # (Nb, C)
    h = jnp.maximum(
        jnp.dot(pooled, w1_ref[...], preferred_element_type=jnp.float32), 0.0)    # (Nb, Ch)
    g = jax.nn.sigmoid(
        jnp.dot(h, w2_ref[...], preferred_element_type=jnp.float32))              # (Nb, C)
    o_ref[...] = (x * g.astype(x.dtype)[:, :, None]).astype(o_ref.dtype)


# ----------------------- tiled path: pass 1 (squeeze + excitation) ---------------------

def _se_gates_kernel(x_ref, w1_ref, w2_ref, g_ref, sum_ref, *, inv_hw):
    # x_ref: (Nb, C, T) lane tile   sum_ref (scratch): (Nb, C) f32   g_ref: (Nb, C, 1)
    t = pl.program_id(1)

    @pl.when(t == 0)
    def _():
        sum_ref[...] = jnp.zeros_like(sum_ref)

    # Accumulate in f32 without materializing an upcast copy of the tile.
    sum_ref[...] += jnp.sum(x_ref[...], axis=-1, dtype=jnp.float32)

    @pl.when(t == pl.num_programs(1) - 1)
    def _():
        pooled = sum_ref[...] * inv_hw                                             # (Nb, C)
        h = jnp.maximum(
            jnp.dot(pooled, w1_ref[...], preferred_element_type=jnp.float32), 0.0)
        g = jax.nn.sigmoid(
            jnp.dot(h, w2_ref[...], preferred_element_type=jnp.float32))
        g_ref[...] = g[:, :, None].astype(g_ref.dtype)    # stored in x's dtype


# --------------------------- tiled path: pass 2 (channel scale) ------------------------

def _se_scale_kernel(x_ref, g_ref, o_ref):
    # x_ref: (Nb, C, T)   g_ref: (Nb, C, 1) resident, already in x's dtype.
    o_ref[...] = (x_ref[...] * g_ref[...]).astype(o_ref.dtype)


# --------------------------------------- helpers ---------------------------------------

def _largest_divisor_leq(n, cap):
    cap = max(1, min(n, cap))
    for d in range(cap, 0, -1):
        if n % d == 0:
            return d
    return 1


def _choose_lane_tile(hw_padded, rows, itemsize, max_block_bytes):
    """Largest multiple-of-128 T dividing hw_padded with rows*T*itemsize <= max_block_bytes."""
    max_t = max(128, (max_block_bytes // (rows * itemsize)) // 128 * 128)
    t = min(max_t, hw_padded)
    t = max(128, (t // 128) * 128)
    while t > 128 and hw_padded % t != 0:
        t -= 128
    return t  # hw_padded is always a multiple of 128 here, so 128 always divides it


# --------------------------------------- wrapper ---------------------------------------

def se_layer(x, w1, w2, *, target_block_bytes=4 * 1024 * 1024, force_tiled=False):
    """Squeeze-and-Excitation forward (matches PyTorch SELayer semantics).

    x : (N, C, H, W)  NCHW, like PyTorch
    w1: (C // r, C)   fc[0].weight  (Linear(C, C//r, bias=False))
    w2: (C, C // r)   fc[2].weight  (Linear(C//r, C, bias=False))
    """
    N, C, H, W = x.shape
    hidden = w1.shape[0]
    HW = H * W
    itemsize = x.dtype.itemsize

    budget = _vmem_budget_bytes()
    x3 = x.reshape(N, C, HW)
    w1_t = jnp.asarray(w1, jnp.float32).T        # (C, hidden)
    w2_t = jnp.asarray(w2, jnp.float32).T        # (hidden, C)
    inv_hw = 1.0 / float(HW)

    # -------- fused single-HBM-read path: batch-gridded, pipelined, TC-parallel --------
    # Per-block VMEM: 2x input buffers + 2x output buffers + ~1x temps ~= 5x block bytes.
    slab_bytes = C * HW * itemsize
    max_nb = budget // (5 * slab_bytes)
    if (not force_tiled) and max_nb >= 1:
        nb = _largest_divisor_leq(N, int(max_nb))
        out = pl.pallas_call(
            functools.partial(_se_fused_kernel, inv_hw=inv_hw),
            out_shape=jax.ShapeDtypeStruct((N, C, HW), x.dtype),
            grid_spec=pltpu.PrefetchScalarGridSpec(
                num_scalar_prefetch=0,
                grid=(N // nb,),
                in_specs=[
                    pl.BlockSpec((nb, C, HW), lambda n: (n, 0, 0)),
                    pl.BlockSpec((C, hidden), lambda n: (0, 0)),   # resident weights
                    pl.BlockSpec((hidden, C), lambda n: (0, 0)),   # resident weights
                ],
                out_specs=pl.BlockSpec((nb, C, HW), lambda n: (n, 0, 0)),
            ),
            compiler_params=pltpu.CompilerParams(
                dimension_semantics=("parallel",),   # batch blocks shard across TCs (v7x)
                vmem_limit_bytes=budget,
            ),
        )(x3, w1_t, w2_t)
        return out.reshape(N, C, H, W)

    # ------------- tiled two-pass path: per-batch slab does not fit in VMEM ------------
    # Pad HW to a multiple of 128 so lane tiles stay (8,128)-aligned and stores unmasked;
    # zero padding contributes nothing to the pooled sum and is sliced off at the end.
    if HW % 128 != 0:
        pad = 128 - (HW % 128)
        x3 = jnp.pad(x3, ((0, 0), (0, 0), (0, pad)))
    HW_p = x3.shape[-1]

    nb = 1                                       # batch axis is the parallel grid axis
    rows = nb * C
    # Pass 2 holds 2x in + 2x out blocks (+ tiny gates); pass 1 holds 3x in blocks.
    max_block_bytes = max(rows * 128 * itemsize, min(target_block_bytes, budget // 6))
    T = _choose_lane_tile(HW_p, rows, itemsize, max_block_bytes)
    num_tiles = HW_p // T
    n_blocks = N // nb

    gates = pl.pallas_call(
        functools.partial(_se_gates_kernel, inv_hw=inv_hw),
        out_shape=jax.ShapeDtypeStruct((N, C, 1), x.dtype),
        grid_spec=pltpu.PrefetchScalarGridSpec(
            num_scalar_prefetch=0,
            grid=(n_blocks, num_tiles),
            in_specs=[
                pl.BlockSpec((nb, C, T), lambda n, t: (n, 0, t),
                             pipeline_mode=pl.Buffered(3)),       # deeper streaming read
                pl.BlockSpec((C, hidden), lambda n, t: (0, 0)),   # resident weights
                pl.BlockSpec((hidden, C), lambda n, t: (0, 0)),   # resident weights
            ],
            out_specs=pl.BlockSpec((nb, C, 1), lambda n, t: (n, 0, 0)),
            scratch_shapes=[pltpu.VMEM((nb, C), jnp.float32)],
        ),
        compiler_params=pltpu.CompilerParams(
            dimension_semantics=("parallel", "arbitrary"),   # batch across TCs, tile reduce
            vmem_limit_bytes=budget,
        ),
    )(x3, w1_t, w2_t)

    out = pl.pallas_call(
        _se_scale_kernel,
        out_shape=jax.ShapeDtypeStruct((N, C, HW_p), x.dtype),
        grid_spec=pltpu.PrefetchScalarGridSpec(
            num_scalar_prefetch=0,
            grid=(n_blocks, num_tiles),
            in_specs=[
                pl.BlockSpec((nb, C, T), lambda n, t: (n, 0, t)),
                pl.BlockSpec((nb, C, 1), lambda n, t: (n, 0, 0)),   # gates resident per n
            ],
            out_specs=pl.BlockSpec((nb, C, T), lambda n, t: (n, 0, t)),
        ),
        compiler_params=pltpu.CompilerParams(
            dimension_semantics=("parallel", "parallel"),
            vmem_limit_bytes=budget,
        ),
    )(x3, gates)
    # TODO(synk): optionally pass input_output_aliases={0: 0} here when the caller can
    # donate x, to save the output HBM allocation (footprint only, not bandwidth).
    if HW_p != HW:
        out = out[:, :, :HW]
    return out.reshape(N, C, H, W)


if __name__ == "__main__":
    key = jax.random.PRNGKey(0)
    k_x, k_w1, k_w2 = jax.random.split(key, 3)

    N, C, H, W = 2, 64, 16, 16
    reduction = 16
    hidden = C // reduction  # 4

    x = jax.random.normal(k_x, (N, C, H, W), dtype=jnp.float32)
    w1 = 0.1 * jax.random.normal(k_w1, (hidden, C), dtype=jnp.float32)   # fc[0].weight
    w2 = 0.1 * jax.random.normal(k_w2, (C, hidden), dtype=jnp.float32)   # fc[2].weight

    def reference(x, w1, w2):
        pooled = x.mean(axis=(2, 3))                          # (N, C)
        h = jnp.maximum(pooled @ w1.T, 0.0)                   # (N, hidden)
        g = jax.nn.sigmoid(h @ w2.T)                          # (N, C)
        return x * g[:, :, None, None]

    y_ref = reference(x, w1, w2)

    # Fused batch-gridded single-read path (default dispatch at this size).
    out_fused = jax.block_until_ready(se_layer(x, w1, w2))
    assert out_fused.shape == x.shape
    assert jnp.allclose(out_fused, y_ref, atol=1e-5, rtol=1e-5)

    # Lane-tiled two-pass path (forced, with tiny blocks to exercise the reduction grid).
    out_tiled = jax.block_until_ready(
        se_layer(x, w1, w2, force_tiled=True, target_block_bytes=32 * 1024))
    assert jnp.allclose(out_tiled, y_ref, atol=1e-5, rtol=1e-5)

    # Ragged spatial extent (H*W not a multiple of 128) exercises the padded tiled path.
    x_r = jax.random.normal(k_x, (N, C, 15, 15), dtype=jnp.float32)
    y_r_ref = reference(x_r, w1, w2)
    out_r = jax.block_until_ready(
        se_layer(x_r, w1, w2, force_tiled=True, target_block_bytes=32 * 1024))
    assert jnp.allclose(out_r, y_r_ref, atol=1e-5, rtol=1e-5)

    print("KERNEL_OK")
</pallas_src>

<mosaic_0001>
module attributes {stable_mosaic.version = 11 : i64} {
  func.func @_se_fused_kernel(%arg0: i32, %arg1: memref<2x64x256xf32, #tpu.memory_space<vmem>>, %arg2: memref<64x4xf32, #tpu.memory_space<vmem>>, %arg3: memref<4x64xf32, #tpu.memory_space<vmem>>, %arg4: memref<2x64x256xf32, #tpu.memory_space<vmem>>) attributes {dimension_semantics = [#tpu.dimension_semantics<parallel>], iteration_bounds = array<i64: 1>, scalar_prefetch = 0 : i64, scratch_operands = 0 : i64, tpu.core_type = #tpu.core_type<tc>, window_params = [{transform_indices = @transform_0, window_bounds = array<i64: 2, 64, 256>}, {pipeline_mode = #tpu.pipeline_mode<synchronous>, transform_indices = @transform_1, window_bounds = array<i64: 64, 4>}, {pipeline_mode = #tpu.pipeline_mode<synchronous>, transform_indices = @transform_2, window_bounds = array<i64: 4, 64>}, {transform_indices = @transform_3, window_bounds = array<i64: 2, 64, 256>}]} {
    %c0 = arith.constant 0 : index
    %c0_0 = arith.constant 0 : index
    %c0_1 = arith.constant 0 : index
    %0 = vector.load %arg1[%c0, %c0_0, %c0_1] : memref<2x64x256xf32, #tpu.memory_space<vmem>>, vector<2x64x256xf32>
    %cst = arith.constant dense<0.000000e+00> : vector<2x64xf32>
    %1 = vector.multi_reduction <add>, %0, %cst [2] : vector<2x64x256xf32> to vector<2x64xf32>
    %cst_2 = arith.constant 3.906250e-03 : f32
    %2 = vector.broadcast %cst_2 : f32 to vector<2x64xf32>
    %3 = arith.mulf %1, %2 : vector<2x64xf32>
    %c0_3 = arith.constant 0 : index
    %c0_4 = arith.constant 0 : index
    %4 = vector.load %arg2[%c0_3, %c0_4] : memref<64x4xf32, #tpu.memory_space<vmem>>, vector<64x4xf32>
    %cst_5 = arith.constant dense<0.000000e+00> : vector<2x4xf32>
    %5 = tpu.matmul %3, %4, %cst_5 {dimension_numbers = #tpu.dot_dimension_numbers<[1], [0], [0], [1], [0, 0, 1, 1], [], []>} : vector<2x64xf32>, vector<64x4xf32>, vector<2x4xf32> -> vector<2x4xf32>
    %cst_6 = arith.constant 0.000000e+00 : f32
    %6 = vector.broadcast %cst_6 : f32 to vector<2x4xf32>
    %7 = arith.maximumf %5, %6 : vector<2x4xf32>
    %c0_7 = arith.constant 0 : index
    %c0_8 = arith.constant 0 : index
    %8 = vector.load %arg3[%c0_7, %c0_8] : memref<4x64xf32, #tpu.memory_space<vmem>>, vector<4x64xf32>
    %cst_9 = arith.constant dense<0.000000e+00> : vector<2x64xf32>
    %9 = tpu.matmul %7, %8, %cst_9 {dimension_numbers = #tpu.dot_dimension_numbers<[1], [0], [0], [1], [0, 0, 1, 1], [], []>} : vector<2x4xf32>, vector<4x64xf32>, vector<2x64xf32> -> vector<2x64xf32>
    %10 = arith.negf %9 : vector<2x64xf32>
    %11 = math.exp %10 : vector<2x64xf32>
    %cst_10 = arith.constant 1.000000e+00 : f32
    %12 = vector.broadcast %cst_10 : f32 to vector<2x64xf32>
    %13 = arith.addf %12, %11 : vector<2x64xf32>
    %14 = arith.divf %12, %13 : vector<2x64xf32>
    %15 = vector.shape_cast %14 : vector<2x64xf32> to vector<2x64x1xf32>
    %16 = vector.broadcast %15 : vector<2x64x1xf32> to vector<2x64x256xf32>
    %17 = arith.mulf %0, %16 : vector<2x64x256xf32>
    %c0_11 = arith.constant 0 : index
    %c0_12 = arith.constant 0 : index
    %c0_13 = arith.constant 0 : index
    %18 = vector.load %arg4[%c0_11, %c0_12, %c0_13] : memref<2x64x256xf32, #tpu.memory_space<vmem>>, vector<2x64x256xf32>
    tpu.vector_store %arg4[%c0_11, %c0_12, %c0_13], %17 {strides = array<i32>} : memref<2x64x256xf32, #tpu.memory_space<vmem>>, vector<2x64x256xf32>,
    return
  }
  func.func @transform_0(%arg0: i32) -> (i32, i32, i32) {
    %c0_i32 = arith.constant 0 : i32
    %c0_i32_0 = arith.constant 0 : i32
    %c0_i32_1 = arith.constant 0 : i32
    return %arg0, %c0_i32, %c0_i32_0 : i32, i32, i32
  }
  func.func @transform_1(%arg0: i32) -> (i32, i32) {
    %c0_i32 = arith.constant 0 : i32
    %c0_i32_0 = arith.constant 0 : i32
    %c0_i32_1 = arith.constant 0 : i32
    return %c0_i32, %c0_i32_0 : i32, i32
  }
  func.func @transform_2(%arg0: i32) -> (i32, i32) {
    %c0_i32 = arith.constant 0 : i32
    %c0_i32_0 = arith.constant 0 : i32
    %c0_i32_1 = arith.constant 0 : i32
    return %c0_i32, %c0_i32_0 : i32, i32
  }
  func.func @transform_3(%arg0: i32) -> (i32, i32, i32) {
    %c0_i32 = arith.constant 0 : i32
    %c0_i32_0 = arith.constant 0 : i32
    %c0_i32_1 = arith.constant 0 : i32
    return %arg0, %c0_i32, %c0_i32_0 : i32, i32, i32
  }
}

</mosaic_0001>

<llo_original>
// kernel: tpu_custom_call.1
$region0: #{tpu_custom_call.1}
  #allocation0 [shape = 'u32[]', space=smem, size = 0x4, offset = 0x4, fixed_abs, tag = 'smem constant byte address 0x4 - core index']
  #allocation1 [shape = 'u32[72,128]{1,0:T(1,128)}', space=vmem, size = 0x9000, scoped, tag = 'internal scratch']
  %s0 = inlined_call_operand.hbm [shape: f32[2,64,256], index: 0, kind: input, shape index: {}]
  %s1 = inlined_call_operand.vmem [shape: f32[64,4], index: 1, kind: input, shape index: {}]
  %s2 = inlined_call_operand.vmem [shape: f32[4,64], index: 2, kind: input, shape index: {}]
  %s3 = inlined_call_operand.hbm [shape: f32[2,64,256], index: 3, kind: output, shape index: {}]
  %s4 = sld [smem:[#allocation0]]
  $region26: #{tpu_custom_call.1} parent=0
    _
  %s6 = ssub.s32 1, %s4
  %s7 = scalar_select 0, %s6, %s4
  $region1: #{tpu_custom_call.1} parent=0
    #allocation2 [shape = 'u8[131072]{0}', space=vmem, size = 0x20000, scoped, tag = 'input window, operand 0, single buffered']
    #allocation3 [shape = 's32[1]{0}', space=sflag, size = 0x4, scoped, tag = 'scoped memory for tpu_custom_call.1']
    #allocation4 [shape = 's32[1]{0}', space=sflag, size = 0x4, scoped, tag = 'scoped memory for tpu_custom_call.1']
    #allocation5 [shape = 'u8[131072]{0}', space=vmem, size = 0x20000, scoped, tag = 'output window, operand 0, single buffered']
    %8 = vsyncpa [#allocation3], 0
    %9 = vsyncpa [#allocation4], 0
    // Predicated region
    $region2: #{tpu_custom_call.1} parent=1 // pred_check
      _
    $region3: #{tpu_custom_call.1} parent=1 // pred_check_branch
      %11 = sbr.rel (0) target = $region5
    $region4: #{tpu_custom_call.1} parent=1 // pred_region
      %13 = vsyncadd [#allocation3], 0
      %s14 = sshll.u32 %s0, 4
      %s15 = int_to_ptr.hbm [resolvable:$true] %s14
      %s16 = sshll.u32 [#allocation2], 4
      %s17 = int_to_ptr.vmem [resolvable:$true] %s16
      %22 = dma.hbm_to_vmem [thread:$0]  %s15, 4096, %s17, [#allocation3], 256, 256, 16
    $region5: #{tpu_custom_call.1} parent=1 // pred_fallthru
      _
    // Predicated region
    $region6: #{tpu_custom_call.1} parent=1 // pred_check
      _
    $region7: #{tpu_custom_call.1} parent=1 // pred_check_branch
      %24 = sbr.rel (0) target = $region9
    $region8: #{tpu_custom_call.1} parent=1 // pred_region
      _
    $region9: #{tpu_custom_call.1} parent=1 // pred_fallthru
      _
    // Predicated region
    $region10: #{tpu_custom_call.1} parent=1 // pred_check
      _
    $region11: #{tpu_custom_call.1} parent=1 // pred_check_branch
      %26 = sbr.rel (0) target = $region13
    $region12: #{tpu_custom_call.1} parent=1 // pred_region
      _
    $region13: #{tpu_custom_call.1} parent=1 // pred_fallthru
      _
    // Predicated region
    $region14: #{tpu_custom_call.1} parent=1 // pred_check
      _
    $region15: #{tpu_custom_call.1} parent=1 // pred_check_branch
      %28 = sbr.rel (0) target = $region17
    $region16: #{tpu_custom_call.1} parent=1 // pred_region
      %30 = dma.done [#allocation3], 4096
    $region17: #{tpu_custom_call.1} parent=1 // pred_fallthru
      _
    %v31 = vld [vmem:[#allocation2] sm:$0xff]
    %v32 = vld [vmem:[#allocation2 + $0x8] sm:$0xff]
    %v33 = vld [vmem:[#allocation2 + $0x10] sm:$0xff]
    %v34 = vld [vmem:[#allocation2 + $0x18] sm:$0xff]
    %v35 = vld [vmem:[#allocation2 + $0x20] sm:$0xff]
    %v36 = vld [vmem:[#allocation2 + $0x28] sm:$0xff]
    %v37 = vld [vmem:[#allocation2 + $0x30] sm:$0xff]
    %v38 = vld [vmem:[#allocation2 + $0x38] sm:$0xff]
    %v39 = vld [vmem:[#allocation2 + $0x40] sm:$0xff]
    %v40 = vld [vmem:[#allocation2 + $0x48] sm:$0xff]
    %v41 = vld [vmem:[#allocation2 + $0x50] sm:$0xff]
    %v42 = vld [vmem:[#allocation2 + $0x58] sm:$0xff]
    %v43 = vld [vmem:[#allocation2 + $0x60] sm:$0xff]
    %v44 = vld [vmem:[#allocation2 + $0x68] sm:$0xff]
    %v45 = vld [vmem:[#allocation2 + $0x70] sm:$0xff]
    %v46 = vld [vmem:[#allocation2 + $0x78] sm:$0xff]
    %v47 = vld [vmem:[#allocation2 + $0x80] sm:$0xff]
    %v48 = vld [vmem:[#allocation2 + $0x88] sm:$0xff]
    %v49 = vld [vmem:[#allocation2 + $0x90] sm:$0xff]
    %v50 = vld [vmem:[#allocation2 + $0x98] sm:$0xff]
    %v51 = vld [vmem:[#allocation2 + $0xa0] sm:$0xff]
    %v52 = vld [vmem:[#allocation2 + $0xa8] sm:$0xff]
    %v53 = vld [vmem:[#allocation2 + $0xb0] sm:$0xff]
    %v54 = vld [vmem:[#allocation2 + $0xb8] sm:$0xff]
    %v55 = vld [vmem:[#allocation2 + $0xc0] sm:$0xff]
    %v56 = vld [vmem:[#allocation2 + $0xc8] sm:$0xff]
    %v57 = vld [vmem:[#allocation2 + $0xd0] sm:$0xff]
    %v58 = vld [vmem:[#allocation2 + $0xd8] sm:$0xff]
    %v59 = vld [vmem:[#allocation2 + $0xe0] sm:$0xff]
    %v60 = vld [vmem:[#allocation2 + $0xe8] sm:$0xff]
    %v61 = vld [vmem:[#allocation2 + $0xf0] sm:$0xff]
    %v62 = vld [vmem:[#allocation2 + $0xf8] sm:$0xff]
    %v63 = vadd.f32 %v31, %v32
    %64 = vadd.xlane.f32.xlu0 %v63
    %v65 = vpop.xlane.xlu0 %64
    %v66 = vadd.f32 %v33, %v34
    %67 = vadd.xlane.f32.xlu0 %v66
    %v68 = vpop.xlane.xlu0 %67
    %v69 = vadd.f32 %v35, %v36
    %70 = vadd.xlane.f32.xlu0 %v69
    %v71 = vpop.xlane.xlu0 %70
    %v72 = vadd.f32 %v37, %v38
    %73 = vadd.xlane.f32.xlu0 %v72
    %v74 = vpop.xlane.xlu0 %73
    %v75 = vadd.f32 %v39, %v40
    %76 = vadd.xlane.f32.xlu0 %v75
    %v77 = vpop.xlane.xlu0 %76
    %v78 = vadd.f32 %v41, %v42
    %79 = vadd.xlane.f32.xlu0 %v78
    %v80 = vpop.xlane.xlu0 %79
    %v81 = vadd.f32 %v43, %v44
    %82 = vadd.xlane.f32.xlu0 %v81
    %v83 = vpop.xlane.xlu0 %82
    %v84 = vadd.f32 %v45, %v46
    %85 = vadd.xlane.f32.xlu0 %v84
    %v86 = vpop.xlane.xlu0 %85
    %v87 = vadd.f32 %v47, %v48
    %88 = vadd.xlane.f32.xlu0 %v87
    %v89 = vpop.xlane.xlu0 %88
    %v90 = vadd.f32 %v49, %v50
    %91 = vadd.xlane.f32.xlu0 %v90
    %v92 = vpop.xlane.xlu0 %91
    %v93 = vadd.f32 %v51, %v52
    %94 = vadd.xlane.f32.xlu0 %v93
    %v95 = vpop.xlane.xlu0 %94
    %v96 = vadd.f32 %v53, %v54
    %97 = vadd.xlane.f32.xlu0 %v96
    %v98 = vpop.xlane.xlu0 %97
    %v99 = vadd.f32 %v55, %v56
    %100 = vadd.xlane.f32.xlu0 %v99
    %v101 = vpop.xlane.xlu0 %100
    %v102 = vadd.f32 %v57, %v58
    %103 = vadd.xlane.f32.xlu0 %v102
    %v104 = vpop.xlane.xlu0 %103
    %v105 = vadd.f32 %v59, %v60
    %106 = vadd.xlane.f32.xlu0 %v105
    %v107 = vpop.xlane.xlu0 %106
    %v108 = vadd.f32 %v61, %v62
    %109 = vadd.xlane.f32.xlu0 %v108
    %v110 = vpop.xlane.xlu0 %109
    %v111 = vmul.f32 %v65, 0.00390625
    %v112 = vmul.f32 %v68, 0.00390625
    %v113 = vmul.f32 %v71, 0.00390625
    %v114 = vmul.f32 %v74, 0.00390625
    %v115 = vmul.f32 %v77, 0.00390625
    %v116 = vmul.f32 %v80, 0.00390625
    %v117 = vmul.f32 %v83, 0.00390625
    %v118 = vmul.f32 %v86, 0.00390625
    %v119 = vmul.f32 %v89, 0.00390625
    %v120 = vmul.f32 %v92, 0.00390625
    %v121 = vmul.f32 %v95, 0.00390625
    %v122 = vmul.f32 %v98, 0.00390625
    %v123 = vmul.f32 %v101, 0.00390625
    %v124 = vmul.f32 %v104, 0.00390625
    %v125 = vmul.f32 %v107, 0.00390625
    %v126 = vmul.f32 %v110, 0.00390625
    %v127 = vld [vmem:[%s1] sm:$0xff]
    %v128 = vld [vmem:[%s1 + $0x8] sm:$0xff]
    %v129 = vld [vmem:[%s1 + $0x10] sm:$0xff]
    %v130 = vld [vmem:[%s1 + $0x18] sm:$0xff]
    %v131 = vld [vmem:[%s1 + $0x20] sm:$0xff]
    %v132 = vld [vmem:[%s1 + $0x28] sm:$0xff]
    %v133 = vld [vmem:[%s1 + $0x30] sm:$0xff]
    %v134 = vld [vmem:[%s1 + $0x38] sm:$0xff]
    %v151 = vlaneseq
    %v152 = vand.u32 %v151, 127
    %v153 = vperm.slane %v111, %v152
    %v154 = vadd.s32 %v152, 4294967288
    %v155 = vperm.slane %v112, %v154
    %vm156 = vcmask 130112
    %v157 = vsel %vm156, %v155, %v153
    %v158 = vadd.s32 %v152, 4294967280
    %v159 = vperm.slane %v113, %v158
    %vm160 = vcmask 195712
    %v161 = vsel %vm160, %v159, %v157
    %v162 = vadd.s32 %v152, 4294967272
    %v163 = vperm.slane %v114, %v162
    %vm164 = vcmask 261312
    %v165 = vsel %vm164, %v163, %v161
    %v166 = vadd.s32 %v152, 4294967264
    %v167 = vperm.slane %v115, %v166
    %vm168 = vcmask 326912
    %v169 = vsel %vm168, %v167, %v165
    %v170 = vadd.s32 %v152, 4294967256
    %v171 = vperm.slane %v116, %v170
    %vm172 = vcmask 392512
    %v173 = vsel %vm172, %v171, %v169
    %v174 = vadd.s32 %v152, 4294967248
    %v175 = vperm.slane %v117, %v174
    %vm176 = vcmask 458112
    %v177 = vsel %vm176, %v175, %v173
    %v178 = vadd.s32 %v152, 4294967240
    %v179 = vperm.slane %v118, %v178
    %vm180 = vcmask 523712
    %v181 = vsel %vm180, %v179, %v177
    %v182 = vperm.slane %v119, %v152
    %v183 = vperm.slane %v120, %v154
    %v184 = vsel %vm156, %v183, %v182
    %v185 = vperm.slane %v121, %v158
    %v186 = vsel %vm160, %v185, %v184
    %v187 = vperm.slane %v122, %v162
    %v188 = vsel %vm164, %v187, %v186
    %v189 = vperm.slane %v123, %v166
    %v190 = vsel %vm168, %v189, %v188
    %v191 = vperm.slane %v124, %v170
    %v192 = vsel %vm172, %v191, %v190
    %v193 = vperm.slane %v125, %v174
    %v194 = vsel %vm176, %v193, %v192
    %v195 = vperm.slane %v126, %v178
    %v196 = vsel %vm180, %v195, %v194
    %vm197 = vcmask 1041409
    %v198 = vsel %vm197, %v196, %v181
    %vm199 = vcmask 523264
    %v200 = vsel %vm199, %v198, 0
    %202 = vmatpush.msra.mxu0 0.0
    %203 = vmatpush.msra.mxu0 0.0
    %204 = vmatpush.msra.mxu0 0.0
    %205 = vmatpush.msra.mxu0 0.0
    %206 = vmatpush.msra.mxu0 0.0
    %207 = vmatpush.msra.mxu0 0.0
    %208 = vmatpush.msra.mxu0 0.0
    %209 = vmatpush.msra.mxu0 0.0
    %210 = vmatpush.msra.mxu0 %v134
    %211 = vmatpush.msra.mxu0 %v133
    %212 = vmatpush.msra.mxu0 %v132
    %213 = vmatpush.msra.mxu0 %v131
    %214 = vmatpush.msra.mxu0 %v130
    %215 = vmatpush.msra.mxu0 %v129
    %216 = vmatpush.msra.mxu0 %v128
    %217 = vmatpush.msra.mxu0 %v127
    %218 = vmatmul.f32.gmra.mxu0 %v200
    %v219 = vpop.f32.mrf.mxu0
    %v220 = vadd.f32 0.0, %v219
    %221 = vdwg.mxu0
    %v222 = vmax.f32 %v220, 0.0
    %v223 = vld [vmem:[%s2] sm:$0xf]
    %vm224 = vcmask 31744
    %v226 = vsel %vm224, %v222, 0
    %vm228 = vcmask 1043456
    %v230 = vsel %vm228, %v223, 0
    %232 = vmatpush.msra.mxu0 0.0
    %233 = vmatpush.msra.mxu0 0.0
    %234 = vmatpush.msra.mxu0 0.0
    %235 = vmatpush.msra.mxu0 0.0
    %236 = vmatpush.msra.mxu0 0.0
    %237 = vmatpush.msra.mxu0 0.0
    %238 = vmatpush.msra.mxu0 0.0
    %239 = vmatpush.msra.mxu0 0.0
    %240 = vmatpush.msra.mxu0 0.0
    %241 = vmatpush.msra.mxu0 0.0
    %242 = vmatpush.msra.mxu0 0.0
    %243 = vmatpush.msra.mxu0 0.0
    %244 = vmatpush.msra.mxu0 0.0
    %245 = vmatpush.msra.mxu0 0.0
    %246 = vmatpush.msra.mxu0 0.0
    %247 = vmatpush.msra.mxu0 %v230
    %248 = vmatmul.f32.gmra.mxu0 %v226
    %v249 = vpop.f32.mrf.mxu0
    %v250 = vadd.f32 0.0, %v249
    %251 = vdwg.mxu0
    %v252 = vxor.u32 %v250, 2147483648
    %v253 = vmul.f32 %v252, 1.442695
    %v254 = vpow.pop %v253
    %v255 = vadd.f32 %v254, 1.0
    %v256 = vrcp.pop %v255
    %v257 = vmul.f32 %v255, %v256
    %v258 = vsub.f32 1.0, %v257
    %v259 = vmul.f32 %v256, %v258
    %v260 = vadd.f32 %v256, %v259
    %vm261 = vweird.f32 %v255
    %vm262 = vweird.f32 %v256
    %vm263 = vmor %vm261, %vm262
    %v264 = vsel %vm263, %v256, %v260
    %v265 = vand.u32 2147483647, %v255
    %vm266 = vcmp.eq.f32.partialorder %v265, 8.507059e+37
    %v267 = vand.u32 %v255, 2147483648
    %v268 = vor.u32 1.1754944e-38, %v267
    %v269 = vsel %vm266, %v268, %v264
    %v270 = vmul.f32 1.0, %v269
    %v271 = vperm.slane %v270, 0
    %v272 = vlaneseq
    %v273 = vshrl.u32 %v272, 7
    %275 = vset.pattern.permute.xlu0 %v273
    %276 = vperm.xlu0 %275, %v271
    %v277 = vpop.permute.xlu0 %276
    %v278 = vlaneseq
    %v279 = vshrl.u32 %v278, 7
    %v280 = vadd.s32 %v279, 8
    %281 = vset.pattern.permute.xlu0 %v280
    %282 = vperm.xlu0 %281, %v271
    %v283 = vpop.permute.xlu0 %282
    %v284 = vlaneseq
    %v285 = vshrl.u32 %v284, 7
    %v286 = vadd.s32 %v285, 16
    %287 = vset.pattern.permute.xlu0 %v286
    %288 = vperm.xlu0 %287, %v271
    %v289 = vpop.permute.xlu0 %288
    %v290 = vlaneseq
    %v291 = vshrl.u32 %v290, 7
    %v292 = vadd.s32 %v291, 24
    %293 = vset.pattern.permute.xlu0 %v292
    %294 = vperm.xlu0 %293, %v271
    %v295 = vpop.permute.xlu0 %294
    %v296 = vlaneseq
    %v297 = vshrl.u32 %v296, 7
    %v298 = vadd.s32 %v297, 32
    %299 = vset.pattern.permute.xlu0 %v298
    %300 = vperm.xlu0 %299, %v271
    %v301 = vpop.permute.xlu0 %300
    %v302 = vlaneseq
    %v303 = vshrl.u32 %v302, 7
    %v304 = vadd.s32 %v303, 40
    %305 = vset.pattern.permute.xlu0 %v304
    %306 = vperm.xlu0 %305, %v271
    %v307 = vpop.permute.xlu0 %306
    %v308 = vlaneseq
    %v309 = vshrl.u32 %v308, 7
    %v310 = vadd.s32 %v309, 48
    %311 = vset.pattern.permute.xlu0 %v310
    %312 = vperm.xlu0 %311, %v271
    %v313 = vpop.permute.xlu0 %312
    %v314 = vlaneseq
    %v315 = vshrl.u32 %v314, 7
    %v316 = vadd.s32 %v315, 56
    %317 = vset.pattern.permute.xlu0 %v316
    %318 = vperm.xlu0 %317, %v271
    %v319 = vpop.permute.xlu0 %318
    %v320 = vperm.slane %v270, 1
    %v321 = vlaneseq
    %v322 = vshrl.u32 %v321, 7
    %324 = vset.pattern.permute.xlu0 %v322
    %325 = vperm.xlu0 %324, %v320
    %v326 = vpop.permute.xlu0 %325
    %v327 = vlaneseq
    %v328 = vshrl.u32 %v327, 7
    %v329 = vadd.s32 %v328, 8
    %330 = vset.pattern.permute.xlu0 %v329
    %331 = vperm.xlu0 %330, %v320
    %v332 = vpop.permute.xlu0 %331
    %v333 = vlaneseq
    %v334 = vshrl.u32 %v333, 7
    %v335 = vadd.s32 %v334, 16
    %336 = vset.pattern.permute.xlu0 %v335
    %337 = vperm.xlu0 %336, %v320
    %v338 = vpop.permute.xlu0 %337
    %v339 = vlaneseq
    %v340 = vshrl.u32 %v339, 7
    %v341 = vadd.s32 %v340, 24
    %342 = vset.pattern.permute.xlu0 %v341
    %343 = vperm.xlu0 %342, %v320
    %v344 = vpop.permute.xlu0 %343
    %v345 = vlaneseq
    %v346 = vshrl.u32 %v345, 7
    %v347 = vadd.s32 %v346, 32
    %348 = vset.pattern.permute.xlu0 %v347
    %349 = vperm.xlu0 %348, %v320
    %v350 = vpop.permute.xlu0 %349
    %v351 = vlaneseq
    %v352 = vshrl.u32 %v351, 7
    %v353 = vadd.s32 %v352, 40
    %354 = vset.pattern.permute.xlu0 %v353
    %355 = vperm.xlu0 %354, %v320
    %v356 = vpop.permute.xlu0 %355
    %v357 = vlaneseq
    %v358 = vshrl.u32 %v357, 7
    %v359 = vadd.s32 %v358, 48
    %360 = vset.pattern.permute.xlu0 %v359
    %361 = vperm.xlu0 %360, %v320
    %v362 = vpop.permute.xlu0 %361
    %v363 = vlaneseq
    %v364 = vshrl.u32 %v363, 7
    %v365 = vadd.s32 %v364, 56
    %366 = vset.pattern.permute.xlu0 %v365
    %367 = vperm.xlu0 %366, %v320
    %v368 = vpop.permute.xlu0 %367
    %v369 = vmul.f32 %v31, %v277
    %v370 = vmul.f32 %v32, %v277
    %v371 = vmul.f32 %v33, %v283
    %v372 = vmul.f32 %v34, %v283
    %v373 = vmul.f32 %v35, %v289
    %v374 = vmul.f32 %v36, %v289
    %v375 = vmul.f32 %v37, %v295
    %v376 = vmul.f32 %v38, %v295
    %v377 = vmul.f32 %v39, %v301
    %v378 = vmul.f32 %v40, %v301
    %v379 = vmul.f32 %v41, %v307
    %v380 = vmul.f32 %v42, %v307
    %v381 = vmul.f32 %v43, %v313
    %v382 = vmul.f32 %v44, %v313
    %v383 = vmul.f32 %v45, %v319
    %v384 = vmul.f32 %v46, %v319
    %v385 = vmul.f32 %v47, %v326
    %v386 = vmul.f32 %v48, %v326
    %v387 = vmul.f32 %v49, %v332
    %v388 = vmul.f32 %v50, %v332
    %v389 = vmul.f32 %v51, %v338
    %v390 = vmul.f32 %v52, %v338
    %v391 = vmul.f32 %v53, %v344
    %v392 = vmul.f32 %v54, %v344
    %v393 = vmul.f32 %v55, %v350
    %v394 = vmul.f32 %v56, %v350
    %v395 = vmul.f32 %v57, %v356
    %v396 = vmul.f32 %v58, %v356
    %v397 = vmul.f32 %v59, %v362
    %v398 = vmul.f32 %v60, %v362
    %v399 = vmul.f32 %v61, %v368
    %v400 = vmul.f32 %v62, %v368
    %401 = vst [vmem:[#allocation5] sm:$0xff] %v369
    %402 = vst [vmem:[#allocation5 + $0x8] sm:$0xff] %v370
    %403 = vst [vmem:[#allocation5 + $0x10] sm:$0xff] %v371
    %404 = vst [vmem:[#allocation5 + $0x18] sm:$0xff] %v372
    %405 = vst [vmem:[#allocation5 + $0x20] sm:$0xff] %v373
    %406 = vst [vmem:[#allocation5 + $0x28] sm:$0xff] %v374
    %407 = vst [vmem:[#allocation5 + $0x30] sm:$0xff] %v375
    %408 = vst [vmem:[#allocation5 + $0x38] sm:$0xff] %v376
    %409 = vst [vmem:[#allocation5 + $0x40] sm:$0xff] %v377
    %410 = vst [vmem:[#allocation5 + $0x48] sm:$0xff] %v378
    %411 = vst [vmem:[#allocation5 + $0x50] sm:$0xff] %v379
    %412 = vst [vmem:[#allocation5 + $0x58] sm:$0xff] %v380
    %413 = vst [vmem:[#allocation5 + $0x60] sm:$0xff] %v381
    %414 = vst [vmem:[#allocation5 + $0x68] sm:$0xff] %v382
    %415 = vst [vmem:[#allocation5 + $0x70] sm:$0xff] %v383
    %416 = vst [vmem:[#allocation5 + $0x78] sm:$0xff] %v384
    %417 = vst [vmem:[#allocation5 + $0x80] sm:$0xff] %v385
    %418 = vst [vmem:[#allocation5 + $0x88] sm:$0xff] %v386
    %419 = vst [vmem:[#allocation5 + $0x90] sm:$0xff] %v387
    %420 = vst [vmem:[#allocation5 + $0x98] sm:$0xff] %v388
    %421 = vst [vmem:[#allocation5 + $0xa0] sm:$0xff] %v389
    %422 = vst [vmem:[#allocation5 + $0xa8] sm:$0xff] %v390
    %423 = vst [vmem:[#allocation5 + $0xb0] sm:$0xff] %v391
    %424 = vst [vmem:[#allocation5 + $0xb8] sm:$0xff] %v392
    %425 = vst [vmem:[#allocation5 + $0xc0] sm:$0xff] %v393
    %426 = vst [vmem:[#allocation5 + $0xc8] sm:$0xff] %v394
    %427 = vst [vmem:[#allocation5 + $0xd0] sm:$0xff] %v395
    %428 = vst [vmem:[#allocation5 + $0xd8] sm:$0xff] %v396
    %429 = vst [vmem:[#allocation5 + $0xe0] sm:$0xff] %v397
    %430 = vst [vmem:[#allocation5 + $0xe8] sm:$0xff] %v398
    %431 = vst [vmem:[#allocation5 + $0xf0] sm:$0xff] %v399
    %432 = vst [vmem:[#allocation5 + $0xf8] sm:$0xff] %v400
    // Predicated region
    $region18: #{tpu_custom_call.1} parent=1 // pred_check
      _
    $region19: #{tpu_custom_call.1} parent=1 // pred_check_branch
      %434 = sbr.rel (0) target = $region21
    $region20: #{tpu_custom_call.1} parent=1 // pred_region
      %436 = vsyncadd [#allocation4], 0
      %s437 = sshll.u32 [#allocation5], 4
      %s438 = int_to_ptr.vmem [resolvable:$true] %s437
      %s439 = sshll.u32 %s3, 4
      %s440 = int_to_ptr.hbm [resolvable:$true] %s439
      %445 = dma.vmem_to_hbm [thread:$0]  %s438, 4096, %s440, [#allocation4], 256, 256, 16
    $region21: #{tpu_custom_call.1} parent=1 // pred_fallthru
      _
    // Predicated region
    $region22: #{tpu_custom_call.1} parent=1 // pred_check
      _
    $region23: #{tpu_custom_call.1} parent=1 // pred_check_branch
      %447 = sbr.rel (0) target = $region25
    $region24: #{tpu_custom_call.1} parent=1 // pred_region
      %449 = dma.done [#allocation4], 4096
    $region25: #{tpu_custom_call.1} parent=1 // pred_fallthru
      _
    %450 = vsyncpa [#allocation3], 1
    %451 = vsyncpa [#allocation4], 1

</llo_original>
